<compile_context>
chip_gen: v7x
topology: tpu7x:2x2x1
jax: 0.10.0
libtpu: 0.0.40
codegen_flags: <defaults>
</compile_context>

<pallas_src>
import jax
import jax.numpy as jnp
from jax import lax
from jax.experimental import pallas as pl
from jax.experimental.pallas import tpu as pltpu

LABEL_SMOOTHING = 0.1
_CONTRACT_LAST = (((1,), (1,)), ((), ()))   # contract last dim of both operands


def _contrastive_kernel(scale_ref, img_ref, txt_ref, wi_ref, wt_ref,
                        loss_ref, i2t_ref, t2i_ref,
                        txt_n_ref, col_esum_ref, col_sum_ref, col_max_ref,
                        diag_ref, row_acc_ref):
  """Row-tiled fused contrastive head.

  Per grid step i: project/normalize one image row tile, form one [TB, B]
  similarity tile, do the i2t (row) CE online and accumulate the t2i (column)
  statistics; finalize t2i + combine at the last step.
  """
  i = pl.program_id(0)
  n_tiles = pl.num_programs(0)
  tb = img_ref.shape[0]
  b = txt_ref.shape[0]
  inv_scale = 1.0 / scale_ref[0]                    # sim is divided by logit_scale

  # ---------- step 0: project + normalize the FULL text batch once ----------
  @pl.when(i == 0)
  def _init():
    txt_p = jnp.dot(txt_ref[...], wt_ref[...],
                    preferred_element_type=jnp.float32)             # [B, P] f32
    txt_f = lax.rsqrt(jnp.maximum(
        jnp.sum(txt_p * txt_p, axis=-1, keepdims=True), 1e-24))
    txt_n_ref[...] = (txt_p * txt_f).astype(jnp.bfloat16)           # resident
    col_esum_ref[...] = jnp.zeros_like(col_esum_ref)
    col_sum_ref[...] = jnp.zeros_like(col_sum_ref)
    col_max_ref[...] = jnp.full(col_max_ref.shape, -1e30, jnp.float32)
    diag_ref[...] = jnp.zeros_like(diag_ref)
    row_acc_ref[0] = 0.0                                             # i2t loss sum
    row_acc_ref[1] = 0.0                                             # i2t correct count

  # ---------- every step: image row tile -> sim tile -> accumulate ----------
  # nn.Linear(bias=False) with weight pre-transposed to [H, P]: canonical MXU
  # contraction, bf16 in / f32 accumulation.
  img_p = jnp.dot(img_ref[...], wi_ref[...],
                  preferred_element_type=jnp.float32)                # [TB, P] f32
  # F.normalize(dim=-1) via rsqrt (EUP); 1/logit_scale folded into this factor.
  img_f = lax.rsqrt(jnp.maximum(
      jnp.sum(img_p * img_p, axis=-1, keepdims=True), 1e-24)) * inv_scale
  img_s = (img_p * img_f).astype(jnp.bfloat16)

  # Single [TB, B] similarity tile.  sim_t2i == sim_i2t.T, handled column-wise
  # on the same tile (no 2nd matmul, no transpose).
  sim = lax.dot_general(img_s, txt_n_ref[...],
                        dimension_numbers=_CONTRACT_LAST,
                        preferred_element_type=jnp.float32)          # [TB, B] f32

  # ONE shared exp pass for both CE directions (m_global = 1/logit_scale is a
  # hard upper bound on sim since both feature sets are unit norm).
  e = jnp.exp(sim - inv_scale)                                       # [TB, B]

  # ONE diagonal extraction shared by both directions (targets = arange(B)).
  g_row = lax.broadcasted_iota(jnp.int32, (tb, b), 0) + i * tb
  g_col = lax.broadcasted_iota(jnp.int32, (tb, b), 1)
  masked = jnp.where(g_row == g_col, sim, 0.0)
  diag_row = jnp.sum(masked, axis=1, keepdims=True)                  # [TB, 1]
  diag_ref[...] += jnp.sum(masked, axis=0, keepdims=True)            # [1, B]

  # Column (t2i) statistics accumulated across tiles.
  col_esum_ref[...] += jnp.sum(e, axis=0, keepdims=True)
  col_sum_ref[...] += jnp.sum(sim, axis=0, keepdims=True)
  col_max_ref[...] = jnp.maximum(col_max_ref[...],
                                 jnp.max(sim, axis=0, keepdims=True))

  # Row (i2t) CE + accuracy for this tile, fully reduced to SMEM scalars.
  row_lse = inv_scale + jnp.log(jnp.sum(e, axis=1, keepdims=True))   # [TB, 1]
  row_mean = jnp.sum(sim, axis=1, keepdims=True) * (1.0 / b)         # mean(z)
  row_max = jnp.max(sim, axis=1, keepdims=True)                      # for acc only
  per_row = -((1.0 - LABEL_SMOOTHING) * (diag_row - row_lse)
              + LABEL_SMOOTHING * (row_mean - row_lse))
  row_acc_ref[0] = row_acc_ref[0] + jnp.sum(per_row)
  # argmax == target  <=>  diag equals the row max (ties count as correct;
  # measure-zero for float inputs).
  row_acc_ref[1] = row_acc_ref[1] + jnp.sum(
      (diag_row >= row_max).astype(jnp.float32))

  # ---------- last step: finalize t2i and combine ----------
  @pl.when(i == n_tiles - 1)
  def _finalize():
    col_lse = inv_scale + jnp.log(col_esum_ref[...])                 # [1, B]
    col_mean = col_sum_ref[...] * (1.0 / b)
    diag_c = diag_ref[...]
    per_col = -((1.0 - LABEL_SMOOTHING) * (diag_c - col_lse)
                + LABEL_SMOOTHING * (col_mean - col_lse))
    loss_t2i = jnp.sum(per_col) * (1.0 / b)
    acc_t2i = jnp.sum(
        (diag_c >= col_max_ref[...]).astype(jnp.float32)) * (1.0 / b)
    loss_i2t = row_acc_ref[0] * (1.0 / b)
    acc_i2t = row_acc_ref[1] * (1.0 / b)
    loss_ref[0] = 0.5 * (loss_i2t + loss_t2i)
    i2t_ref[0] = acc_i2t
    t2i_ref[0] = acc_t2i


def contrastive_head_pallas(logit_scale, img_cls, txt_cls, w_img_t, w_txt_t,
                            *, row_tile=256):
  """img_cls/txt_cls: [B, H] CLS features; w_*_t: [H, P] projection weights
  (pre-transposed and ideally pre-cast to bf16 once at init)."""
  B, H = img_cls.shape
  P = w_img_t.shape[1]
  tb = B if B <= row_tile else row_tile
  assert B % tb == 0, "batch must be divisible by the row tile"
  n_tiles = B // tb

  scale = jnp.reshape(logit_scale.astype(jnp.float32), (1,))
  # No-op converts if the caller already stores bf16 params (recommended).
  w_img_t = w_img_t.astype(jnp.bfloat16)
  w_txt_t = w_txt_t.astype(jnp.bfloat16)

  smem = pl.BlockSpec(memory_space=pltpu.MemorySpace.SMEM)
  grid_spec = pltpu.PrefetchScalarGridSpec(
      num_scalar_prefetch=0,
      grid=(n_tiles,),
      in_specs=[
          smem,                                        # logit_scale (scalar)
          pl.BlockSpec((tb, H), lambda i: (i, 0)),     # image CLS rows (tiled)
          pl.BlockSpec((B, H), lambda i: (0, 0)),      # text CLS (resident)
          pl.BlockSpec((H, P), lambda i: (0, 0)),      # w_image_proj.T (resident)
          pl.BlockSpec((H, P), lambda i: (0, 0)),      # w_text_proj.T (resident)
      ],
      out_specs=(smem, smem, smem),
      scratch_shapes=[
          pltpu.VMEM((B, P), jnp.bfloat16),   # normalized text features
          pltpu.VMEM((1, B), jnp.float32),    # column exp-sum (t2i lse)
          pltpu.VMEM((1, B), jnp.float32),    # column sum (label smoothing)
          pltpu.VMEM((1, B), jnp.float32),    # column max (t2i accuracy)
          pltpu.VMEM((1, B), jnp.float32),    # diagonal sim values (by column)
          pltpu.SMEM((2,), jnp.float32),      # i2t loss-sum / correct-count
      ])

  out_shape = (jax.ShapeDtypeStruct((1,), jnp.float32),) * 3
  # vmem_limit: actual use is bounded by the tile; 48 MiB is safe on all gens
  # (v5e scoped default is only 16 MiB; v7x physical VMEM is 64 MiB).
  loss, i2t, t2i = pl.pallas_call(
      _contrastive_kernel,
      out_shape=out_shape,
      grid_spec=grid_spec,
      compiler_params=pltpu.CompilerParams(
          dimension_semantics=("arbitrary",),
          vmem_limit_bytes=48 * 1024 * 1024),
  )(scale,
    img_cls.astype(jnp.bfloat16), txt_cls.astype(jnp.bfloat16),
    w_img_t, w_txt_t)
  return loss[0], i2t[0], t2i[0]


# ----------------------- plain-JAX reference (for checking) -----------------
def contrastive_head_ref(logit_scale, img_cls, txt_cls, w_img_t, w_txt_t):
  """Same math as the module; mirrors the kernel's bf16 quantization points so
  the comparison is apples-to-apples (f32-vs-bf16 deltas are pure rounding)."""
  bf, f32 = jnp.bfloat16, jnp.float32
  img_p = jnp.dot(img_cls.astype(bf), w_img_t.astype(bf),
                  preferred_element_type=f32)
  txt_p = jnp.dot(txt_cls.astype(bf), w_txt_t.astype(bf),
                  preferred_element_type=f32)
  inv_scale = 1.0 / logit_scale.astype(f32)
  img_f = lax.rsqrt(jnp.maximum(
      jnp.sum(img_p * img_p, -1, keepdims=True), 1e-24)) * inv_scale
  txt_f = lax.rsqrt(jnp.maximum(
      jnp.sum(txt_p * txt_p, -1, keepdims=True), 1e-24))
  sim_i2t = jnp.dot((img_p * img_f).astype(bf), (txt_p * txt_f).astype(bf).T,
                    preferred_element_type=f32)
  sim_t2i = sim_i2t.T
  B = sim_i2t.shape[0]
  tgt = jnp.arange(B)

  def ce(logits):
    logp = jax.nn.log_softmax(logits, axis=-1)
    nll = -logp[jnp.arange(B), tgt]
    smooth = -jnp.mean(logp, axis=-1)
    return jnp.mean((1 - LABEL_SMOOTHING) * nll + LABEL_SMOOTHING * smooth)

  loss = 0.5 * (ce(sim_i2t) + ce(sim_t2i))
  acc_i = jnp.mean((jnp.argmax(sim_i2t, -1) == tgt).astype(f32))
  acc_t = jnp.mean((jnp.argmax(sim_t2i, -1) == tgt).astype(f32))
  return loss, acc_i, acc_t


# ----------------------- model wrapper ---------------------------------------
def forward(params, image_embeds, input_ids, text_attention_mask):
  # Stand-in qformer (glue).  CLS selection happens BEFORE the projection /
  # embedding lookup (image CLS = 'last' token, text CLS = token 0).
  image_cls = image_embeds[:, -1, :] @ params['w_q']                 # [B, H]
  text_cls = (params['tok_emb'][input_ids[:, 0]]
              * text_attention_mask[:, 0, None])                     # [B, H]
  loss, i2t_acc, t2i_acc = contrastive_head_pallas(
      params['logit_scale'], image_cls, text_cls,
      params['w_image_proj_t'], params['w_text_proj_t'])
  return {'total_loss': loss, 'i2t_acc': i2t_acc, 't2i_acc': t2i_acc}


if __name__ == "__main__":
  # Small but lane-dense shapes (H, P multiples of 128; B multiple of 8).
  # NOTE: at this demo B=8 the kernel is pure launch/DMA overhead; the tiling /
  # pass-reduction work targets production batch sizes.
  B, S_IMG, S_TXT, E, H, P, V = 8, 16, 8, 64, 128, 256, 100

  key = jax.random.PRNGKey(0)
  k = jax.random.split(key, 8)
  # Torch nn.Linear weight layout is [P, H]; transpose + cast ONCE at init so
  # no per-step convert / relayout is needed (review opts 3+4).
  w_image_proj = 0.05 * jax.random.normal(k[2], (P, H), jnp.float32)
  w_text_proj = 0.05 * jax.random.normal(k[3], (P, H), jnp.float32)
  params = {
      'logit_scale': jnp.asarray(0.07, jnp.float32),
      'w_q': 0.05 * jax.random.normal(k[0], (E, H), jnp.float32),
      'tok_emb': 0.05 * jax.random.normal(k[1], (V, H), jnp.float32),
      'w_image_proj_t': jnp.asarray(w_image_proj.T, jnp.bfloat16),   # [H, P]
      'w_text_proj_t': jnp.asarray(w_text_proj.T, jnp.bfloat16),     # [H, P]
  }
  image_embeds = jax.random.normal(k[4], (B, S_IMG, E), jnp.float32)
  input_ids = jax.random.randint(k[5], (B, S_TXT), 0, V)
  text_attention_mask = jnp.ones((B, S_TXT), jnp.float32)

  out = forward(params, image_embeds, input_ids, text_attention_mask)
  jax.block_until_ready(out)

  # Cross-check against a pure-JAX reference of the same mixed-precision math.
  img_cls = image_embeds[:, -1, :] @ params['w_q']
  txt_cls = params['tok_emb'][input_ids[:, 0]] * text_attention_mask[:, 0, None]
  ref = contrastive_head_ref(params['logit_scale'], img_cls, txt_cls,
                             params['w_image_proj_t'], params['w_text_proj_t'])
  assert jnp.allclose(out['total_loss'], ref[0], rtol=1e-3, atol=1e-3), (
      out['total_loss'], ref[0])
  assert jnp.allclose(out['i2t_acc'], ref[1], atol=1e-6), (out['i2t_acc'], ref[1])
  assert jnp.allclose(out['t2i_acc'], ref[2], atol=1e-6), (out['t2i_acc'], ref[2])

  print("KERNEL_OK")
</pallas_src>

<mosaic_0001>
module attributes {stable_mosaic.version = 11 : i64} {
  func.func @_contrastive_kernel(%arg0: i32, %arg1: memref<1xf32, #tpu.memory_space<smem>>, %arg2: memref<8x128xbf16, #tpu.memory_space<vmem>>, %arg3: memref<8x128xbf16, #tpu.memory_space<vmem>>, %arg4: memref<128x256xbf16, #tpu.memory_space<vmem>>, %arg5: memref<128x256xbf16, #tpu.memory_space<vmem>>, %arg6: memref<1xf32, #tpu.memory_space<smem>>, %arg7: memref<1xf32, #tpu.memory_space<smem>>, %arg8: memref<1xf32, #tpu.memory_space<smem>>, %arg9: memref<8x256xbf16, #tpu.memory_space<vmem>>, %arg10: memref<1x8xf32, #tpu.memory_space<vmem>>, %arg11: memref<1x8xf32, #tpu.memory_space<vmem>>, %arg12: memref<1x8xf32, #tpu.memory_space<vmem>>, %arg13: memref<1x8xf32, #tpu.memory_space<vmem>>, %arg14: memref<2xf32, #tpu.memory_space<smem>>) attributes {dimension_semantics = [#tpu.dimension_semantics<arbitrary>], iteration_bounds = array<i64: 1>, scalar_prefetch = 0 : i64, scratch_operands = 6 : i64, tpu.core_type = #tpu.core_type<tc>, window_params = [{transform_indices = @transform_0, window_bounds = array<i64: 1>}, {transform_indices = @transform_1, window_bounds = array<i64: 8, 128>}, {pipeline_mode = #tpu.pipeline_mode<synchronous>, transform_indices = @transform_2, window_bounds = array<i64: 8, 128>}, {pipeline_mode = #tpu.pipeline_mode<synchronous>, transform_indices = @transform_3, window_bounds = array<i64: 128, 256>}, {pipeline_mode = #tpu.pipeline_mode<synchronous>, transform_indices = @transform_4, window_bounds = array<i64: 128, 256>}, {transform_indices = @transform_5, window_bounds = array<i64: 1>}, {transform_indices = @transform_6, window_bounds = array<i64: 1>}, {transform_indices = @transform_7, window_bounds = array<i64: 1>}]} {
    %c0 = arith.constant 0 : index
    %0 = memref.load %arg1[%c0] : memref<1xf32, #tpu.memory_space<smem>>
    %cst = arith.constant 1.000000e+00 : f32
    %1 = arith.divf %cst, %0 : f32
    %c0_i32 = arith.constant 0 : i32
    %2 = arith.cmpi eq, %arg0, %c0_i32 : i32
    %3 = arith.extui %2 : i1 to i32
    %c0_i32_0 = arith.constant 0 : i32
    %4 = arith.cmpi ne, %3, %c0_i32_0 : i32
    scf.if %4 {
      %c0_47 = arith.constant 0 : index
      %c0_48 = arith.constant 0 : index
      %94 = vector.load %arg3[%c0_47, %c0_48] : memref<8x128xbf16, #tpu.memory_space<vmem>>, vector<8x128xbf16>
      %c0_49 = arith.constant 0 : index
      %c0_50 = arith.constant 0 : index
      %95 = vector.load %arg5[%c0_49, %c0_50] : memref<128x256xbf16, #tpu.memory_space<vmem>>, vector<128x256xbf16>
      %cst_51 = arith.constant dense<0.000000e+00> : vector<8x256xf32>
      %96 = tpu.matmul %94, %95, %cst_51 {dimension_numbers = #tpu.dot_dimension_numbers<[1], [0], [0], [1], [0, 0, 1, 1], [], []>} : vector<8x128xbf16>, vector<128x256xbf16>, vector<8x256xf32> -> vector<8x256xf32>
      %97 = arith.mulf %96, %96 : vector<8x256xf32>
      %cst_52 = arith.constant dense<0.000000e+00> : vector<8xf32>
      %98 = vector.multi_reduction <add>, %97, %cst_52 [1] : vector<8x256xf32> to vector<8xf32>
      %99 = vector.shape_cast %98 : vector<8xf32> to vector<8x1xf32>
      %cst_53 = arith.constant 1.000000e-24 : f32
      %100 = vector.broadcast %cst_53 : f32 to vector<8x1xf32>
      %101 = arith.maximumf %99, %100 : vector<8x1xf32>
      %102 = math.rsqrt %101 : vector<8x1xf32>
      %103 = vector.broadcast %102 : vector<8x1xf32> to vector<8x256xf32>
      %104 = arith.mulf %96, %103 : vector<8x256xf32>
      %105 = arith.truncf %104 : vector<8x256xf32> to vector<8x256xbf16>
      %c0_54 = arith.constant 0 : index
      %c0_55 = arith.constant 0 : index
      %106 = vector.load %arg9[%c0_54, %c0_55] : memref<8x256xbf16, #tpu.memory_space<vmem>>, vector<8x256xbf16>
      tpu.vector_store %arg9[%c0_54, %c0_55], %105 {strides = array<i32>} : memref<8x256xbf16, #tpu.memory_space<vmem>>, vector<8x256xbf16>,
      %cst_56 = arith.constant 0.000000e+00 : f32
      %107 = vector.broadcast %cst_56 : f32 to vector<1x8xf32>
      %c0_57 = arith.constant 0 : index
      %c0_58 = arith.constant 0 : index
      %108 = vector.load %arg10[%c0_57, %c0_58] : memref<1x8xf32, #tpu.memory_space<vmem>>, vector<1x8xf32>
      tpu.vector_store %arg10[%c0_57, %c0_58], %107 {strides = array<i32>} : memref<1x8xf32, #tpu.memory_space<vmem>>, vector<1x8xf32>,
      %cst_59 = arith.constant 0.000000e+00 : f32
      %109 = vector.broadcast %cst_59 : f32 to vector<1x8xf32>
      %c0_60 = arith.constant 0 : index
      %c0_61 = arith.constant 0 : index
      %110 = vector.load %arg11[%c0_60, %c0_61] : memref<1x8xf32, #tpu.memory_space<vmem>>, vector<1x8xf32>
      tpu.vector_store %arg11[%c0_60, %c0_61], %109 {strides = array<i32>} : memref<1x8xf32, #tpu.memory_space<vmem>>, vector<1x8xf32>,
      %cst_62 = arith.constant -1.000000e+30 : f32
      %111 = vector.broadcast %cst_62 : f32 to vector<1x8xf32>
      %c0_63 = arith.constant 0 : index
      %c0_64 = arith.constant 0 : index
      %112 = vector.load %arg12[%c0_63, %c0_64] : memref<1x8xf32, #tpu.memory_space<vmem>>, vector<1x8xf32>
      tpu.vector_store %arg12[%c0_63, %c0_64], %111 {strides = array<i32>} : memref<1x8xf32, #tpu.memory_space<vmem>>, vector<1x8xf32>,
      %cst_65 = arith.constant 0.000000e+00 : f32
      %113 = vector.broadcast %cst_65 : f32 to vector<1x8xf32>
      %c0_66 = arith.constant 0 : index
      %c0_67 = arith.constant 0 : index
      %114 = vector.load %arg13[%c0_66, %c0_67] : memref<1x8xf32, #tpu.memory_space<vmem>>, vector<1x8xf32>
      tpu.vector_store %arg13[%c0_66, %c0_67], %113 {strides = array<i32>} : memref<1x8xf32, #tpu.memory_space<vmem>>, vector<1x8xf32>,
      %cst_68 = arith.constant 0.000000e+00 : f32
      %c0_69 = arith.constant 0 : index
      %115 = memref.load %arg14[%c0_69] : memref<2xf32, #tpu.memory_space<smem>>
      memref.store %cst_68, %arg14[%c0_69] : memref<2xf32, #tpu.memory_space<smem>>
      %cst_70 = arith.constant 0.000000e+00 : f32
      %c1_71 = arith.constant 1 : index
      %116 = memref.load %arg14[%c1_71] : memref<2xf32, #tpu.memory_space<smem>>
      memref.store %cst_70, %arg14[%c1_71] : memref<2xf32, #tpu.memory_space<smem>>
    } else {
    }
    %c0_1 = arith.constant 0 : index
    %c0_2 = arith.constant 0 : index
    %5 = vector.load %arg2[%c0_1, %c0_2] : memref<8x128xbf16, #tpu.memory_space<vmem>>, vector<8x128xbf16>
    %c0_3 = arith.constant 0 : index
    %c0_4 = arith.constant 0 : index
    %6 = vector.load %arg4[%c0_3, %c0_4] : memref<128x256xbf16, #tpu.memory_space<vmem>>, vector<128x256xbf16>
    %cst_5 = arith.constant dense<0.000000e+00> : vector<8x256xf32>
    %7 = tpu.matmul %5, %6, %cst_5 {dimension_numbers = #tpu.dot_dimension_numbers<[1], [0], [0], [1], [0, 0, 1, 1], [], []>} : vector<8x128xbf16>, vector<128x256xbf16>, vector<8x256xf32> -> vector<8x256xf32>
    %8 = arith.mulf %7, %7 : vector<8x256xf32>
    %cst_6 = arith.constant dense<0.000000e+00> : vector<8xf32>
    %9 = vector.multi_reduction <add>, %8, %cst_6 [1] : vector<8x256xf32> to vector<8xf32>
    %10 = vector.shape_cast %9 : vector<8xf32> to vector<8x1xf32>
    %cst_7 = arith.constant 1.000000e-24 : f32
    %11 = vector.broadcast %cst_7 : f32 to vector<8x1xf32>
    %12 = arith.maximumf %10, %11 : vector<8x1xf32>
    %13 = math.rsqrt %12 : vector<8x1xf32>
    %14 = vector.broadcast %1 : f32 to vector<8x1xf32>
    %15 = arith.mulf %13, %14 : vector<8x1xf32>
    %16 = vector.broadcast %15 : vector<8x1xf32> to vector<8x256xf32>
    %17 = arith.mulf %7, %16 : vector<8x256xf32>
    %18 = arith.truncf %17 : vector<8x256xf32> to vector<8x256xbf16>
    %c0_8 = arith.constant 0 : index
    %c0_9 = arith.constant 0 : index
    %19 = vector.load %arg9[%c0_8, %c0_9] : memref<8x256xbf16, #tpu.memory_space<vmem>>, vector<8x256xbf16>
    %cst_10 = arith.constant dense<0.000000e+00> : vector<8x8xf32>
    %20 = tpu.matmul %18, %19, %cst_10 {dimension_numbers = #tpu.dot_dimension_numbers<[1], [1], [0], [0], [0, 0, 1, 0], [], []>} : vector<8x256xbf16>, vector<8x256xbf16>, vector<8x8xf32> -> vector<8x8xf32>
    %21 = vector.broadcast %1 : f32 to vector<8x8xf32>
    %22 = arith.subf %20, %21 : vector<8x8xf32>
    %23 = math.exp %22 : vector<8x8xf32>
    %24 = tpu.iota {dimensions = array<i32: 0>} : vector<8x8xi32>
    %c8_i32 = arith.constant 8 : i32
    %25 = arith.muli %arg0, %c8_i32 : i32
    %26 = vector.broadcast %25 : i32 to vector<8x8xi32>
    %27 = arith.addi %24, %26 : vector<8x8xi32>
    %28 = tpu.iota {dimensions = array<i32: 1>} : vector<8x8xi32>
    %29 = arith.cmpi eq, %27, %28 : vector<8x8xi32>
    %cst_11 = arith.constant 0.000000e+00 : f32
    %30 = vector.broadcast %cst_11 : f32 to vector<8x8xf32>
    %31 = arith.select %29, %20, %30 : vector<8x8xi1>, vector<8x8xf32>
    %cst_12 = arith.constant dense<0.000000e+00> : vector<8xf32>
    %32 = vector.multi_reduction <add>, %31, %cst_12 [1] : vector<8x8xf32> to vector<8xf32>
    %33 = vector.shape_cast %32 : vector<8xf32> to vector<8x1xf32>
    %c0_13 = arith.constant 0 : index
    %c0_14 = arith.constant 0 : index
    %34 = vector.load %arg13[%c0_13, %c0_14] : memref<1x8xf32, #tpu.memory_space<vmem>>, vector<1x8xf32>
    %cst_15 = arith.constant dense<0.000000e+00> : vector<8xf32>
    %35 = vector.multi_reduction <add>, %31, %cst_15 [0] : vector<8x8xf32> to vector<8xf32>
    %36 = vector.shape_cast %35 : vector<8xf32> to vector<1x8xf32>
    %37 = arith.addf %34, %36 : vector<1x8xf32>
    %c0_16 = arith.constant 0 : index
    %c0_17 = arith.constant 0 : index
    %38 = vector.load %arg13[%c0_16, %c0_17] : memref<1x8xf32, #tpu.memory_space<vmem>>, vector<1x8xf32>
    tpu.vector_store %arg13[%c0_16, %c0_17], %37 {strides = array<i32>} : memref<1x8xf32, #tpu.memory_space<vmem>>, vector<1x8xf32>,
    %c0_18 = arith.constant 0 : index
    %c0_19 = arith.constant 0 : index
    %39 = vector.load %arg10[%c0_18, %c0_19] : memref<1x8xf32, #tpu.memory_space<vmem>>, vector<1x8xf32>
    %cst_20 = arith.constant dense<0.000000e+00> : vector<8xf32>
    %40 = vector.multi_reduction <add>, %23, %cst_20 [0] : vector<8x8xf32> to vector<8xf32>
    %41 = vector.shape_cast %40 : vector<8xf32> to vector<1x8xf32>
    %42 = arith.addf %39, %41 : vector<1x8xf32>
    %c0_21 = arith.constant 0 : index
    %c0_22 = arith.constant 0 : index
    %43 = vector.load %arg10[%c0_21, %c0_22] : memref<1x8xf32, #tpu.memory_space<vmem>>, vector<1x8xf32>
    tpu.vector_store %arg10[%c0_21, %c0_22], %42 {strides = array<i32>} : memref<1x8xf32, #tpu.memory_space<vmem>>, vector<1x8xf32>,
    %c0_23 = arith.constant 0 : index
    %c0_24 = arith.constant 0 : index
    %44 = vector.load %arg11[%c0_23, %c0_24] : memref<1x8xf32, #tpu.memory_space<vmem>>, vector<1x8xf32>
    %cst_25 = arith.constant dense<0.000000e+00> : vector<8xf32>
    %45 = vector.multi_reduction <add>, %20, %cst_25 [0] : vector<8x8xf32> to vector<8xf32>
    %46 = vector.shape_cast %45 : vector<8xf32> to vector<1x8xf32>
    %47 = arith.addf %44, %46 : vector<1x8xf32>
    %c0_26 = arith.constant 0 : index
    %c0_27 = arith.constant 0 : index
    %48 = vector.load %arg11[%c0_26, %c0_27] : memref<1x8xf32, #tpu.memory_space<vmem>>, vector<1x8xf32>
    tpu.vector_store %arg11[%c0_26, %c0_27], %47 {strides = array<i32>} : memref<1x8xf32, #tpu.memory_space<vmem>>, vector<1x8xf32>,
    %c0_28 = arith.constant 0 : index
    %c0_29 = arith.constant 0 : index
    %49 = vector.load %arg12[%c0_28, %c0_29] : memref<1x8xf32, #tpu.memory_space<vmem>>, vector<1x8xf32>
    %cst_30 = arith.constant dense<0xFF800000> : vector<8xf32>
    %50 = vector.multi_reduction <maximumf>, %20, %cst_30 [0] : vector<8x8xf32> to vector<8xf32>
    %51 = vector.shape_cast %50 : vector<8xf32> to vector<1x8xf32>
    %52 = arith.maximumf %49, %51 : vector<1x8xf32>
    %c0_31 = arith.constant 0 : index
    %c0_32 = arith.constant 0 : index
    %53 = vector.load %arg12[%c0_31, %c0_32] : memref<1x8xf32, #tpu.memory_space<vmem>>, vector<1x8xf32>
    tpu.vector_store %arg12[%c0_31, %c0_32], %52 {strides = array<i32>} : memref<1x8xf32, #tpu.memory_space<vmem>>, vector<1x8xf32>,
    %cst_33 = arith.constant dense<0.000000e+00> : vector<8xf32>
    %54 = vector.multi_reduction <add>, %23, %cst_33 [1] : vector<8x8xf32> to vector<8xf32>
    %55 = vector.shape_cast %54 : vector<8xf32> to vector<8x1xf32>
    %56 = math.log %55 : vector<8x1xf32>
    %57 = vector.broadcast %1 : f32 to vector<8x1xf32>
    %58 = arith.addf %57, %56 : vector<8x1xf32>
    %cst_34 = arith.constant dense<0.000000e+00> : vector<8xf32>
    %59 = vector.multi_reduction <add>, %20, %cst_34 [1] : vector<8x8xf32> to vector<8xf32>
    %60 = vector.shape_cast %59 : vector<8xf32> to vector<8x1xf32>
    %cst_35 = arith.constant 1.250000e-01 : f32
    %61 = vector.broadcast %cst_35 : f32 to vector<8x1xf32>
    %62 = arith.mulf %60, %61 : vector<8x1xf32>
    %cst_36 = arith.constant dense<0xFF800000> : vector<8xf32>
    %63 = vector.multi_reduction <maximumf>, %20, %cst_36 [1] : vector<8x8xf32> to vector<8xf32>
    %64 = vector.shape_cast %63 : vector<8xf32> to vector<8x1xf32>
    %65 = arith.subf %33, %58 : vector<8x1xf32>
    %cst_37 = arith.constant 0.899999976 : f32
    %66 = vector.broadcast %cst_37 : f32 to vector<8x1xf32>
    %67 = arith.mulf %66, %65 : vector<8x1xf32>
    %68 = arith.subf %62, %58 : vector<8x1xf32>
    %cst_38 = arith.constant 1.000000e-01 : f32
    %69 = vector.broadcast %cst_38 : f32 to vector<8x1xf32>
    %70 = arith.mulf %69, %68 : vector<8x1xf32>
    %71 = arith.addf %67, %70 : vector<8x1xf32>
    %cst_39 = arith.constant 0.000000e+00 : f32
    %72 = vector.broadcast %cst_39 : f32 to vector<8x1xf32>
    %73 = arith.subf %72, %71 : vector<8x1xf32>
    %c0_40 = arith.constant 0 : index
    %74 = memref.load %arg14[%c0_40] : memref<2xf32, #tpu.memory_space<smem>>
    %75 = vector.shape_cast %73 : vector<8x1xf32> to vector<1x8x1xf32>
    %cst_41 = arith.constant dense<0.000000e+00> : vector<1xf32>
    %76 = vector.multi_reduction <add>, %75, %cst_41 [1, 2] : vector<1x8x1xf32> to vector<1xf32>
    %77 = vector.shape_cast %76 : vector<1xf32> to vector<1x1x1xf32>
    %78 = vector.extract %77[0, 0, 0] : f32 from vector<1x1x1xf32>
    %79 = arith.addf %74, %78 : f32
    %c0_42 = arith.constant 0 : index
    %80 = memref.load %arg14[%c0_42] : memref<2xf32, #tpu.memory_space<smem>>
    memref.store %79, %arg14[%c0_42] : memref<2xf32, #tpu.memory_space<smem>>
    %c1 = arith.constant 1 : index
    %81 = memref.load %arg14[%c1] : memref<2xf32, #tpu.memory_space<smem>>
    %82 = arith.cmpf oge, %33, %64 : vector<8x1xf32>
    %83 = arith.extui %82 : vector<8x1xi1> to vector<8x1xi32>
    %84 = arith.sitofp %83 : vector<8x1xi32> to vector<8x1xf32>
    %85 = vector.shape_cast %84 : vector<8x1xf32> to vector<1x8x1xf32>
    %cst_43 = arith.constant dense<0.000000e+00> : vector<1xf32>
    %86 = vector.multi_reduction <add>, %85, %cst_43 [1, 2] : vector<1x8x1xf32> to vector<1xf32>
    %87 = vector.shape_cast %86 : vector<1xf32> to vector<1x1x1xf32>
    %88 = vector.extract %87[0, 0, 0] : f32 from vector<1x1x1xf32>
    %89 = arith.addf %81, %88 : f32
    %c1_44 = arith.constant 1 : index
    %90 = memref.load %arg14[%c1_44] : memref<2xf32, #tpu.memory_space<smem>>
    memref.store %89, %arg14[%c1_44] : memref<2xf32, #tpu.memory_space<smem>>
    %c0_i32_45 = arith.constant 0 : i32
    %91 = arith.cmpi eq, %arg0, %c0_i32_45 : i32
    %92 = arith.extui %91 : i1 to i32
    %c0_i32_46 = arith.constant 0 : i32
    %93 = arith.cmpi ne, %92, %c0_i32_46 : i32
    scf.if %93 {
      %c0_47 = arith.constant 0 : index
      %c0_48 = arith.constant 0 : index
      %94 = vector.load %arg10[%c0_47, %c0_48] : memref<1x8xf32, #tpu.memory_space<vmem>>, vector<1x8xf32>
      %95 = math.log %94 : vector<1x8xf32>
      %96 = vector.broadcast %1 : f32 to vector<1x8xf32>
      %97 = arith.addf %96, %95 : vector<1x8xf32>
      %c0_49 = arith.constant 0 : index
      %c0_50 = arith.constant 0 : index
      %98 = vector.load %arg11[%c0_49, %c0_50] : memref<1x8xf32, #tpu.memory_space<vmem>>, vector<1x8xf32>
      %cst_51 = arith.constant 1.250000e-01 : f32
      %99 = vector.broadcast %cst_51 : f32 to vector<1x8xf32>
      %100 = arith.mulf %98, %99 : vector<1x8xf32>
      %c0_52 = arith.constant 0 : index
      %c0_53 = arith.constant 0 : index
      %101 = vector.load %arg13[%c0_52, %c0_53] : memref<1x8xf32, #tpu.memory_space<vmem>>, vector<1x8xf32>
      %102 = arith.subf %101, %97 : vector<1x8xf32>
      %cst_54 = arith.constant 0.899999976 : f32
      %103 = vector.broadcast %cst_54 : f32 to vector<1x8xf32>
      %104 = arith.mulf %103, %102 : vector<1x8xf32>
      %105 = arith.subf %100, %97 : vector<1x8xf32>
      %cst_55 = arith.constant 1.000000e-01 : f32
      %106 = vector.broadcast %cst_55 : f32 to vector<1x8xf32>
      %107 = arith.mulf %106, %105 : vector<1x8xf32>
      %108 = arith.addf %104, %107 : vector<1x8xf32>
      %cst_56 = arith.constant 0.000000e+00 : f32
      %109 = vector.broadcast %cst_56 : f32 to vector<1x8xf32>
      %110 = arith.subf %109, %108 : vector<1x8xf32>
      %111 = vector.shape_cast %110 : vector<1x8xf32> to vector<1x1x8xf32>
      %cst_57 = arith.constant dense<0.000000e+00> : vector<1xf32>
      %112 = vector.multi_reduction <add>, %111, %cst_57 [1, 2] : vector<1x1x8xf32> to vector<1xf32>
      %113 = vector.shape_cast %112 : vector<1xf32> to vector<1x1x1xf32>
      %114 = vector.extract %113[0, 0, 0] : f32 from vector<1x1x1xf32>
      %cst_58 = arith.constant 1.250000e-01 : f32
      %115 = arith.mulf %114, %cst_58 : f32
      %c0_59 = arith.constant 0 : index
      %c0_60 = arith.constant 0 : index
      %116 = vector.load %arg12[%c0_59, %c0_60] : memref<1x8xf32, #tpu.memory_space<vmem>>, vector<1x8xf32>
      %117 = arith.cmpf oge, %101, %116 : vector<1x8xf32>
      %118 = arith.extui %117 : vector<1x8xi1> to vector<1x8xi32>
      %119 = arith.sitofp %118 : vector<1x8xi32> to vector<1x8xf32>
      %120 = vector.shape_cast %119 : vector<1x8xf32> to vector<1x1x8xf32>
      %cst_61 = arith.constant dense<0.000000e+00> : vector<1xf32>
      %121 = vector.multi_reduction <add>, %120, %cst_61 [1, 2] : vector<1x1x8xf32> to vector<1xf32>
      %122 = vector.shape_cast %121 : vector<1xf32> to vector<1x1x1xf32>
      %123 = vector.extract %122[0, 0, 0] : f32 from vector<1x1x1xf32>
      %cst_62 = arith.constant 1.250000e-01 : f32
      %124 = arith.mulf %123, %cst_62 : f32
      %c0_63 = arith.constant 0 : index
      %125 = memref.load %arg14[%c0_63] : memref<2xf32, #tpu.memory_space<smem>>
      %cst_64 = arith.constant 1.250000e-01 : f32
      %126 = arith.mulf %125, %cst_64 : f32
      %c1_65 = arith.constant 1 : index
      %127 = memref.load %arg14[%c1_65] : memref<2xf32, #tpu.memory_space<smem>>
      %cst_66 = arith.constant 1.250000e-01 : f32
      %128 = arith.mulf %127, %cst_66 : f32
      %129 = arith.addf %126, %115 : f32
      %cst_67 = arith.constant 5.000000e-01 : f32
      %130 = arith.mulf %cst_67, %129 : f32
      %c0_68 = arith.constant 0 : index
      %131 = memref.load %arg6[%c0_68] : memref<1xf32, #tpu.memory_space<smem>>
      memref.store %130, %arg6[%c0_68] : memref<1xf32, #tpu.memory_space<smem>>
      %c0_69 = arith.constant 0 : index
      %132 = memref.load %arg7[%c0_69] : memref<1xf32, #tpu.memory_space<smem>>
      memref.store %128, %arg7[%c0_69] : memref<1xf32, #tpu.memory_space<smem>>
      %c0_70 = arith.constant 0 : index
      %133 = memref.load %arg8[%c0_70] : memref<1xf32, #tpu.memory_space<smem>>
      memref.store %124, %arg8[%c0_70] : memref<1xf32, #tpu.memory_space<smem>>
    } else {
    }
    return
  }
  func.func @transform_0(%arg0: i32) -> i32 {
    %c0_i32 = arith.constant 0 : i32
    %c0_i32_0 = arith.constant 0 : i32
    return %c0_i32 : i32
  }
  func.func @transform_1(%arg0: i32) -> (i32, i32) {
    %c0_i32 = arith.constant 0 : i32
    %c0_i32_0 = arith.constant 0 : i32
    return %arg0, %c0_i32 : i32, i32
  }
  func.func @transform_2(%arg0: i32) -> (i32, i32) {
    %c0_i32 = arith.constant 0 : i32
    %c0_i32_0 = arith.constant 0 : i32
    %c0_i32_1 = arith.constant 0 : i32
    return %c0_i32, %c0_i32_0 : i32, i32
  }
  func.func @transform_3(%arg0: i32) -> (i32, i32) {
    %c0_i32 = arith.constant 0 : i32
    %c0_i32_0 = arith.constant 0 : i32
    %c0_i32_1 = arith.constant 0 : i32
    return %c0_i32, %c0_i32_0 : i32, i32
  }
  func.func @transform_4(%arg0: i32) -> (i32, i32) {
    %c0_i32 = arith.constant 0 : i32
    %c0_i32_0 = arith.constant 0 : i32
    %c0_i32_1 = arith.constant 0 : i32
    return %c0_i32, %c0_i32_0 : i32, i32
  }
  func.func @transform_5(%arg0: i32) -> i32 {
    %c0_i32 = arith.constant 0 : i32
    %c0_i32_0 = arith.constant 0 : i32
    return %c0_i32 : i32
  }
  func.func @transform_6(%arg0: i32) -> i32 {
    %c0_i32 = arith.constant 0 : i32
    %c0_i32_0 = arith.constant 0 : i32
    return %c0_i32 : i32
  }
  func.func @transform_7(%arg0: i32) -> i32 {
    %c0_i32 = arith.constant 0 : i32
    %c0_i32_0 = arith.constant 0 : i32
    return %c0_i32 : i32
  }
}

</mosaic_0001>

<llo_original>
// kernel: tpu_custom_call.1
$region0: #{tpu_custom_call.1}
  #allocation0 [shape = 'u32[]', space=smem, size = 0x4, offset = 0x4, fixed_abs, tag = 'smem constant byte address 0x4 - core index']
  #allocation1 [shape = 'u32[144,128]{1,0:T(1,128)}', space=vmem, size = 0x12000, scoped, tag = 'internal scratch']
  #allocation2 [shape = 'bf16[8,256]{1,0:T(8,128)(2,1)}', space=vmem, size = 0x1000, scoped, tag = 'scratch operand']
  #allocation3 [shape = 'f32[1,8]{1,0:T(1,128)}', space=vmem, size = 0x200, scoped, tag = 'scratch operand']
  #allocation4 [shape = 'f32[1,8]{1,0:T(1,128)}', space=vmem, size = 0x200, scoped, tag = 'scratch operand']
  #allocation5 [shape = 'f32[1,8]{1,0:T(1,128)}', space=vmem, size = 0x200, scoped, tag = 'scratch operand']
  #allocation6 [shape = 'f32[1,8]{1,0:T(1,128)}', space=vmem, size = 0x200, scoped, tag = 'scratch operand']
  #allocation7 [shape = 'f32[2]{0:T(128)}', space=smem, size = 0x200, scoped, tag = 'scratch operand']
  #allocation8 [shape = 'f32[1]{0:T(128)S(6)}', space=smem, size = 0x200, scoped, tag = 'scoped memory for tpu_custom_call.1']
  %s0 = inlined_call_operand.<no memory space> [shape: f32[1], index: 0, kind: input, shape index: {}]
  %s1 = inlined_call_operand.hbm [shape: bf16[8,128], index: 1, kind: input, shape index: {}]
  %s2 = inlined_call_operand.vmem [shape: bf16[8,128], index: 2, kind: input, shape index: {}]
  %s3 = inlined_call_operand.hbm [shape: bf16[128,256], index: 3, kind: input, shape index: {}]
  %s4 = inlined_call_operand.hbm [shape: bf16[128,256], index: 4, kind: input, shape index: {}]
  %s5 = inlined_call_operand.hbm [shape: f32[1], index: 5, kind: output, shape index: {0}]
  %s6 = inlined_call_operand.hbm [shape: f32[1], index: 6, kind: output, shape index: {1}]
  %s7 = inlined_call_operand.hbm [shape: f32[1], index: 7, kind: output, shape index: {2}]
  %8 = xla_tuple %s5, %s6, %s7
  %s9 = sld [smem:[#allocation0]]
  $region66: #{tpu_custom_call.1} parent=0
    _
  %s11 = ssub.s32 1, %s9
  %s12 = scalar_select 0, %s11, %s9
  %13 = sst [smem:[#allocation8]] %s0
  $region1: #{tpu_custom_call.1} parent=0
    #allocation9 [shape = 'u8[2048]{0}', space=vmem, size = 0x800, scoped, tag = 'input window, operand 1, single buffered']
    #allocation10 [shape = 's32[1]{0}', space=sflag, size = 0x4, scoped, tag = 'scoped memory for tpu_custom_call.1']
    #allocation11 [shape = 's32[1]{0}', space=sflag, size = 0x4, scoped, tag = 'scoped memory for tpu_custom_call.1']
    #allocation12 [shape = 'u8[65536]{0}', space=vmem, size = 0x10000, scoped, tag = 'input window, operand 3, single buffered']
    #allocation13 [shape = 's32[1]{0}', space=sflag, size = 0x4, scoped, tag = 'scoped memory for tpu_custom_call.1']
    #allocation14 [shape = 'u8[65536]{0}', space=vmem, size = 0x10000, scoped, tag = 'input window, operand 4, single buffered']
    #allocation15 [shape = 'u8[512]{0}', space=smem, size = 0x200, scoped, tag = 'output window, operand 0, single buffered']
    #allocation16 [shape = 'u8[512]{0}', space=smem, size = 0x200, scoped, tag = 'output window, operand 1, single buffered']
    #allocation17 [shape = 's32[1]{0}', space=sflag, size = 0x4, scoped, tag = 'scoped memory for tpu_custom_call.1']
    #allocation18 [shape = 'u8[512]{0}', space=smem, size = 0x200, scoped, tag = 'output window, operand 2, single buffered']
    %14 = vsyncpa [#allocation10], 0
    %15 = vsyncpa [#allocation13], 0
    %16 = vsyncpa [#allocation11], 0
    %17 = vsyncpa [#allocation17], 0
    // Predicated region
    $region2: #{tpu_custom_call.1} parent=1 // pred_check
      _
    $region3: #{tpu_custom_call.1} parent=1 // pred_check_branch
      %19 = sbr.rel (0) target = $region5
    $region4: #{tpu_custom_call.1} parent=1 // pred_region
      _
    $region5: #{tpu_custom_call.1} parent=1 // pred_fallthru
      _
    // Predicated region
    $region6: #{tpu_custom_call.1} parent=1 // pred_check
      _
    $region7: #{tpu_custom_call.1} parent=1 // pred_check_branch
      %21 = sbr.rel (0) target = $region9
    $region8: #{tpu_custom_call.1} parent=1 // pred_region
      %s23 = ssub.s32 64, 64
      %24 = vsyncadd [#allocation10], %s23
      %s26 = sshll.u32 [#allocation9], 4
      %s27 = int_to_ptr.vmem [resolvable:$true] %s26
      %29 = dma.hbm_to_vmem [thread:$0]  %s1, 64, %s27, [#allocation10]
    $region9: #{tpu_custom_call.1} parent=1 // pred_fallthru
      _
    // Predicated region
    $region10: #{tpu_custom_call.1} parent=1 // pred_check
      _
    $region11: #{tpu_custom_call.1} parent=1 // pred_check_branch
      %31 = sbr.rel (0) target = $region13
    $region12: #{tpu_custom_call.1} parent=1 // pred_region
      _
    $region13: #{tpu_custom_call.1} parent=1 // pred_fallthru
      _
    // Predicated region
    $region14: #{tpu_custom_call.1} parent=1 // pred_check
      _
    $region15: #{tpu_custom_call.1} parent=1 // pred_check_branch
      %33 = sbr.rel (0) target = $region17
    $region16: #{tpu_custom_call.1} parent=1 // pred_region
      %s35 = ssub.s32 2048, 2048
      %36 = vsyncadd [#allocation13], %s35
      %s37 = sshll.u32 [#allocation12], 4
      %s38 = int_to_ptr.vmem [resolvable:$true] %s37
      %43 = dma.hbm_to_vmem [thread:$0]  %s3, 2048, %s38, [#allocation13], 128, 128, 8
    $region17: #{tpu_custom_call.1} parent=1 // pred_fallthru
      _
    // Predicated region
    $region18: #{tpu_custom_call.1} parent=1 // pred_check
      _
    $region19: #{tpu_custom_call.1} parent=1 // pred_check_branch
      %45 = sbr.rel (0) target = $region21
    $region20: #{tpu_custom_call.1} parent=1 // pred_region
      %s47 = ssub.s32 2048, 2048
      %48 = vsyncadd [#allocation13], %s47
      %s49 = sshll.u32 [#allocation14], 4
      %s50 = int_to_ptr.vmem [resolvable:$true] %s49
      %55 = dma.hbm_to_vmem [thread:$0]  %s4, 2048, %s50, [#allocation13], 128, 128, 8
    $region21: #{tpu_custom_call.1} parent=1 // pred_fallthru
      _
    // Predicated region
    $region22: #{tpu_custom_call.1} parent=1 // pred_check
      _
    $region23: #{tpu_custom_call.1} parent=1 // pred_check_branch
      %57 = sbr.rel (0) target = $region25
    $region24: #{tpu_custom_call.1} parent=1 // pred_region
      %58 = dma.done [#allocation10], 64
    $region25: #{tpu_custom_call.1} parent=1 // pred_fallthru
      _
    // Predicated region
    $region26: #{tpu_custom_call.1} parent=1 // pred_check
      _
    $region27: #{tpu_custom_call.1} parent=1 // pred_check_branch
      %60 = sbr.rel (0) target = $region29
    $region28: #{tpu_custom_call.1} parent=1 // pred_region
      %61 = dma.done [#allocation13], 2048
    $region29: #{tpu_custom_call.1} parent=1 // pred_fallthru
      _
    // Predicated region
    $region30: #{tpu_custom_call.1} parent=1 // pred_check
      _
    $region31: #{tpu_custom_call.1} parent=1 // pred_check_branch
      %63 = sbr.rel (0) target = $region33
    $region32: #{tpu_custom_call.1} parent=1 // pred_region
      %64 = dma.done [#allocation13], 2048
    $region33: #{tpu_custom_call.1} parent=1 // pred_fallthru
      _
    %s66 = sld [smem:[#allocation8]]
    %v67 = vstv %s66
    %v68 = vrcp.pop %v67
    %s69 = vtos %v68
    %p70 = scmp.eq.s32.totalorder 0, 0
    // Predicated region
    $region34: #{tpu_custom_call.1} parent=1 // pred_check
      %p71 = pneg %p70
    $region35: #{tpu_custom_call.1} parent=1 // pred_check_branch
      %73 = sbr.rel (%p71) target = $region37
    $region36: #{tpu_custom_call.1} parent=1 // pred_region
      %v74 = vld [vmem:[%s2] sm:$0xf]
      %v75 = vld [vmem:[#allocation14] sm:$0xff]
      %v76 = vld [vmem:[#allocation14 + $0x8] sm:$0xff]
      %v77 = vld [vmem:[#allocation14 + $0x10] sm:$0xff]
      %v78 = vld [vmem:[#allocation14 + $0x18] sm:$0xff]
      %v79 = vld [vmem:[#allocation14 + $0x20] sm:$0xff]
      %v80 = vld [vmem:[#allocation14 + $0x28] sm:$0xff]
      %v81 = vld [vmem:[#allocation14 + $0x30] sm:$0xff]
      %v82 = vld [vmem:[#allocation14 + $0x38] sm:$0xff]
      %v83 = vld [vmem:[#allocation14 + $0x40] sm:$0xff]
      %v84 = vld [vmem:[#allocation14 + $0x48] sm:$0xff]
      %v85 = vld [vmem:[#allocation14 + $0x50] sm:$0xff]
      %v86 = vld [vmem:[#allocation14 + $0x58] sm:$0xff]
      %v87 = vld [vmem:[#allocation14 + $0x60] sm:$0xff]
      %v88 = vld [vmem:[#allocation14 + $0x68] sm:$0xff]
      %v89 = vld [vmem:[#allocation14 + $0x70] sm:$0xff]
      %v90 = vld [vmem:[#allocation14 + $0x78] sm:$0xff]
      %v107 = vunpack.c.l.b16 %v75
      %v108 = vunpack.c.h.b16 %v75
      %v109 = vunpack.c.l.b16 %v76
      %v110 = vunpack.c.h.b16 %v76
      %v111 = vunpack.c.l.b16 %v77
      %v112 = vunpack.c.h.b16 %v77
      %v113 = vunpack.c.l.b16 %v78
      %v114 = vunpack.c.h.b16 %v78
      %v115 = vunpack.c.l.b16 %v79
      %v116 = vunpack.c.h.b16 %v79
      %v117 = vunpack.c.l.b16 %v80
      %v118 = vunpack.c.h.b16 %v80
      %v119 = vunpack.c.l.b16 %v81
      %v120 = vunpack.c.h.b16 %v81
      %v121 = vunpack.c.l.b16 %v82
      %v122 = vunpack.c.h.b16 %v82
      %v123 = vunpack.c.l.b16 %v83
      %v124 = vunpack.c.h.b16 %v83
      %v125 = vunpack.c.l.b16 %v84
      %v126 = vunpack.c.h.b16 %v84
      %v127 = vunpack.c.l.b16 %v85
      %v128 = vunpack.c.h.b16 %v85
      %v129 = vunpack.c.l.b16 %v86
      %v130 = vunpack.c.h.b16 %v86
      %v131 = vunpack.c.l.b16 %v87
      %v132 = vunpack.c.h.b16 %v87
      %v133 = vunpack.c.l.b16 %v88
      %v134 = vunpack.c.h.b16 %v88
      %v135 = vunpack.c.l.b16 %v89
      %v136 = vunpack.c.h.b16 %v89
      %v137 = vunpack.c.l.b16 %v90
      %v138 = vunpack.c.h.b16 %v90
      %v139 = vpack.c.b16 %v109, %v107
      %v140 = vpack.c.b16 %v110, %v108
      %v141 = vpack.c.b16 %v113, %v111
      %v142 = vpack.c.b16 %v114, %v112
      %v143 = vpack.c.b16 %v117, %v115
      %v144 = vpack.c.b16 %v118, %v116
      %v145 = vpack.c.b16 %v121, %v119
      %v146 = vpack.c.b16 %v122, %v120
      %v147 = vpack.c.b16 %v125, %v123
      %v148 = vpack.c.b16 %v126, %v124
      %v149 = vpack.c.b16 %v129, %v127
      %v150 = vpack.c.b16 %v130, %v128
      %v151 = vpack.c.b16 %v133, %v131
      %v152 = vpack.c.b16 %v134, %v132
      %v153 = vpack.c.b16 %v137, %v135
      %v154 = vpack.c.b16 %v138, %v136
      %171 = vmatprep.subr.bf16.mxu0 %v140
      %172 = vmatpush1.bf16.msra.mxu0 %v139
      %173 = vmatprep.subr.bf16.mxu0 %v142
      %174 = vmatpush1.bf16.msra.mxu0 %v141
      %175 = vmatprep.subr.bf16.mxu0 %v144
      %176 = vmatpush1.bf16.msra.mxu0 %v143
      %177 = vmatprep.subr.bf16.mxu0 %v146
      %178 = vmatpush1.bf16.msra.mxu0 %v145
      %179 = vmatprep.subr.bf16.mxu0 %v148
      %180 = vmatpush1.bf16.msra.mxu0 %v147
      %181 = vmatprep.subr.bf16.mxu0 %v150
      %182 = vmatpush1.bf16.msra.mxu0 %v149
      %183 = vmatprep.subr.bf16.mxu0 %v152
      %184 = vmatpush1.bf16.msra.mxu0 %v151
      %185 = vmatprep.subr.bf16.mxu0 %v154
      %186 = vmatpush1.bf16.msra.mxu0 %v153
      %187 = vmatprep.subr.bf16.mxu0 0
      %188 = vmatpush1.bf16.msra.mxu0 0
      %189 = vmatprep.subr.bf16.mxu0 0
      %190 = vmatpush1.bf16.msra.mxu0 0
      %191 = vmatprep.subr.bf16.mxu0 0
      %192 = vmatpush1.bf16.msra.mxu0 0
      %193 = vmatprep.subr.bf16.mxu0 0
      %194 = vmatpush1.bf16.msra.mxu0 0
      %195 = vmatprep.subr.bf16.mxu0 0
      %196 = vmatpush1.bf16.msra.mxu0 0
      %197 = vmatprep.subr.bf16.mxu0 0
      %198 = vmatpush1.bf16.msra.mxu0 0
      %199 = vmatprep.subr.bf16.mxu0 0
      %200 = vmatpush1.bf16.msra.mxu0 0
      %201 = vmatprep.subr.bf16.mxu0 0
      %202 = vmatpush1.bf16.msra.mxu0 0
      %203 = vmatprep.mubr.bf16.mxu0 0
      %204 = vmatmul.mubr.bf16.gmra.mrb[0].mxu0 %v74
      %v205 = vpop.f32.mrb[0].mxu0
      %v206 = vadd.f32 0.0, %v205
      %v207 = vpop.f32.mrb[0].mxu0
      %v208 = vadd.f32 0.0, %v207
      %v209 = vpop.f32.mrb[0].mxu0
      %v210 = vpop.f32.mrb[0].mxu0
      %211 = vdwg.mxu0
      %v212 = vmul.f32 %v206, %v206
      %v213 = vmul.f32 %v208, %v208
      %v214 = vadd.f32 %v212, %v213
      %215 = vadd.xlane.f32.xlu0 %v214
      %v216 = vpop.xlane.xlu0 %215
      %v217 = vmax.f32 %v216, 1e-24
      %v218 = vrsqrt.pop %v217
      %v219 = vmul.f32 %v206, %v218
      %v220 = vmul.f32 %v208, %v218
      %v221 = vpack.c.bf16 %v219, %v219
      %v222 = vpack.c.bf16 %v220, %v220
      %v225 = vunpack.c.l.b16 %v221
      %v226 = vunpack.c.l.b16 %v222
      %v227 = vpack.c.b16 %v226, %v225
      %229 = vst [vmem:[#allocation2] sm:$0xff] %v227
      %vm230 = vcmask 57344
      %231 = vst.msk [vmem:[#allocation3] sm:$0x1] %vm230, 0.0
      %232 = vst.msk [vmem:[#allocation4] sm:$0x1] %vm230, 0.0
      %233 = vst.msk [vmem:[#allocation5] sm:$0x1] %vm230, -1e+30
      %234 = vst.msk [vmem:[#allocation6] sm:$0x1] %vm230, 0.0
      %s235 = scalar_lea.smem [#allocation7], 0
      %236 = sst [smem:[%s235]] 0.0
      %s237 = scalar_lea.smem [#allocation7], 1
      %238 = sst [smem:[%s237]] 0.0
    $region37: #{tpu_custom_call.1} parent=1 // pred_fallthru
      _
    %v239 = vld [vmem:[#allocation9] sm:$0xf]
    %v240 = vld [vmem:[#allocation12] sm:$0xff]
    %v241 = vld [vmem:[#allocation12 + $0x8] sm:$0xff]
    %v242 = vld [vmem:[#allocation12 + $0x10] sm:$0xff]
    %v243 = vld [vmem:[#allocation12 + $0x18] sm:$0xff]
    %v244 = vld [vmem:[#allocation12 + $0x20] sm:$0xff]
    %v245 = vld [vmem:[#allocation12 + $0x28] sm:$0xff]
    %v246 = vld [vmem:[#allocation12 + $0x30] sm:$0xff]
    %v247 = vld [vmem:[#allocation12 + $0x38] sm:$0xff]
    %v248 = vld [vmem:[#allocation12 + $0x40] sm:$0xff]
    %v249 = vld [vmem:[#allocation12 + $0x48] sm:$0xff]
    %v250 = vld [vmem:[#allocation12 + $0x50] sm:$0xff]
    %v251 = vld [vmem:[#allocation12 + $0x58] sm:$0xff]
    %v252 = vld [vmem:[#allocation12 + $0x60] sm:$0xff]
    %v253 = vld [vmem:[#allocation12 + $0x68] sm:$0xff]
    %v254 = vld [vmem:[#allocation12 + $0x70] sm:$0xff]
    %v255 = vld [vmem:[#allocation12 + $0x78] sm:$0xff]
    %v272 = vunpack.c.l.b16 %v240
    %v273 = vunpack.c.h.b16 %v240
    %v274 = vunpack.c.l.b16 %v241
    %v275 = vunpack.c.h.b16 %v241
    %v276 = vunpack.c.l.b16 %v242
    %v277 = vunpack.c.h.b16 %v242
    %v278 = vunpack.c.l.b16 %v243
    %v279 = vunpack.c.h.b16 %v243
    %v280 = vunpack.c.l.b16 %v244
    %v281 = vunpack.c.h.b16 %v244
    %v282 = vunpack.c.l.b16 %v245
    %v283 = vunpack.c.h.b16 %v245
    %v284 = vunpack.c.l.b16 %v246
    %v285 = vunpack.c.h.b16 %v246
    %v286 = vunpack.c.l.b16 %v247
    %v287 = vunpack.c.h.b16 %v247
    %v288 = vunpack.c.l.b16 %v248
    %v289 = vunpack.c.h.b16 %v248
    %v290 = vunpack.c.l.b16 %v249
    %v291 = vunpack.c.h.b16 %v249
    %v292 = vunpack.c.l.b16 %v250
    %v293 = vunpack.c.h.b16 %v250
    %v294 = vunpack.c.l.b16 %v251
    %v295 = vunpack.c.h.b16 %v251
    %v296 = vunpack.c.l.b16 %v252
    %v297 = vunpack.c.h.b16 %v252
    %v298 = vunpack.c.l.b16 %v253
    %v299 = vunpack.c.h.b16 %v253
    %v300 = vunpack.c.l.b16 %v254
    %v301 = vunpack.c.h.b16 %v254
    %v302 = vunpack.c.l.b16 %v255
    %v303 = vunpack.c.h.b16 %v255
    %v304 = vpack.c.b16 %v274, %v272
    %v305 = vpack.c.b16 %v275, %v273
    %v306 = vpack.c.b16 %v278, %v276
    %v307 = vpack.c.b16 %v279, %v277
    %v308 = vpack.c.b16 %v282, %v280
    %v309 = vpack.c.b16 %v283, %v281
    %v310 = vpack.c.b16 %v286, %v284
    %v311 = vpack.c.b16 %v287, %v285
    %v312 = vpack.c.b16 %v290, %v288
    %v313 = vpack.c.b16 %v291, %v289
    %v314 = vpack.c.b16 %v294, %v292
    %v315 = vpack.c.b16 %v295, %v293
    %v316 = vpack.c.b16 %v298, %v296
    %v317 = vpack.c.b16 %v299, %v297
    %v318 = vpack.c.b16 %v302, %v300
    %v319 = vpack.c.b16 %v303, %v301
    %336 = vmatprep.subr.bf16.mxu0 %v305
    %337 = vmatpush1.bf16.msra.mxu0 %v304
    %338 = vmatprep.subr.bf16.mxu0 %v307
    %339 = vmatpush1.bf16.msra.mxu0 %v306
    %340 = vmatprep.subr.bf16.mxu0 %v309
    %341 = vmatpush1.bf16.msra.mxu0 %v308
    %342 = vmatprep.subr.bf16.mxu0 %v311
    %343 = vmatpush1.bf16.msra.mxu0 %v310
    %344 = vmatprep.subr.bf16.mxu0 %v313
    %345 = vmatpush1.bf16.msra.mxu0 %v312
    %346 = vmatprep.subr.bf16.mxu0 %v315
    %347 = vmatpush1.bf16.msra.mxu0 %v314
    %348 = vmatprep.subr.bf16.mxu0 %v317
    %349 = vmatpush1.bf16.msra.mxu0 %v316
    %350 = vmatprep.subr.bf16.mxu0 %v319
    %351 = vmatpush1.bf16.msra.mxu0 %v318
    %352 = vmatprep.subr.bf16.mxu0 0
    %353 = vmatpush1.bf16.msra.mxu0 0
    %354 = vmatprep.subr.bf16.mxu0 0
    %355 = vmatpush1.bf16.msra.mxu0 0
    %356 = vmatprep.subr.bf16.mxu0 0
    %357 = vmatpush1.bf16.msra.mxu0 0
    %358 = vmatprep.subr.bf16.mxu0 0
    %359 = vmatpush1.bf16.msra.mxu0 0
    %360 = vmatprep.subr.bf16.mxu0 0
    %361 = vmatpush1.bf16.msra.mxu0 0
    %362 = vmatprep.subr.bf16.mxu0 0
    %363 = vmatpush1.bf16.msra.mxu0 0
    %364 = vmatprep.subr.bf16.mxu0 0
    %365 = vmatpush1.bf16.msra.mxu0 0
    %366 = vmatprep.subr.bf16.mxu0 0
    %367 = vmatpush1.bf16.msra.mxu0 0
    %368 = vmatprep.mubr.bf16.mxu0 0
    %369 = vmatmul.mubr.bf16.gmra.mrb[0].mxu0 %v239
    %v370 = vpop.f32.mrb[0].mxu0
    %v371 = vadd.f32 0.0, %v370
    %v372 = vpop.f32.mrb[0].mxu0
    %v373 = vadd.f32 0.0, %v372
    %v374 = vpop.f32.mrb[0].mxu0
    %v375 = vpop.f32.mrb[0].mxu0
    %376 = vdwg.mxu0
    %v377 = vmul.f32 %v371, %v371
    %v378 = vmul.f32 %v373, %v373
    %v379 = vadd.f32 %v377, %v378
    %380 = vadd.xlane.f32.xlu0 %v379
    %v381 = vpop.xlane.xlu0 %380
    %v382 = vmax.f32 %v381, 1e-24
    %v383 = vrsqrt.pop %v382
    %v384 = vstv %s69
    %v385 = vmul.f32 %v383, %v384
    %v386 = vmul.f32 %v371, %v385
    %v387 = vmul.f32 %v373, %v385
    %v388 = vpack.c.bf16 %v386, %v386
    %v389 = vpack.c.bf16 %v387, %v387
    %v390 = vld [vmem:[#allocation2] sm:$0xff]
    %v392 = vunpack.c.l.b16 %v390
    %v393 = vunpack.c.h.b16 %v390
    %v394 = vpack.c.b16 %v392, %v392
    %v395 = vpack.c.b16 %v393, %v393
    %398 = vmatprep.subr.bf16.mxu0 %v395
    %399 = vmatpush1.bf16.xpose.msra.mxu0 %v394
    %400 = vmatprep.subr.bf16.mxu0 0
    %401 = vmatpush1.bf16.xpose.msra.mxu0 0
    %402 = vmatprep.subr.bf16.mxu0 0
    %403 = vmatpush1.bf16.xpose.msra.mxu0 0
    %404 = vmatprep.subr.bf16.mxu0 0
    %405 = vmatpush1.bf16.xpose.msra.mxu0 0
    %406 = vmatprep.subr.bf16.mxu0 0
    %407 = vmatpush1.bf16.xpose.msra.mxu0 0
    %408 = vmatprep.subr.bf16.mxu0 0
    %409 = vmatpush1.bf16.xpose.msra.mxu0 0
    %410 = vmatprep.subr.bf16.mxu0 0
    %411 = vmatpush1.bf16.xpose.msra.mxu0 0
    %412 = vmatprep.subr.bf16.mxu0 0
    %413 = vmatpush1.bf16.xpose.msra.mxu0 0
    %414 = vmatprep.subr.bf16.mxu0 0
    %415 = vmatpush1.bf16.xpose.msra.mxu0 0
    %416 = vmatprep.subr.bf16.mxu0 0
    %417 = vmatpush1.bf16.xpose.msra.mxu0 0
    %418 = vmatprep.subr.bf16.mxu0 0
    %419 = vmatpush1.bf16.xpose.msra.mxu0 0
    %420 = vmatprep.subr.bf16.mxu0 0
    %421 = vmatpush1.bf16.xpose.msra.mxu0 0
    %422 = vmatprep.subr.bf16.mxu0 0
    %423 = vmatpush1.bf16.xpose.msra.mxu0 0
    %424 = vmatprep.subr.bf16.mxu0 0
    %425 = vmatpush1.bf16.xpose.msra.mxu0 0
    %426 = vmatprep.subr.bf16.mxu0 0
    %427 = vmatpush1.bf16.xpose.msra.mxu0 0
    %428 = vmatprep.subr.bf16.mxu0 0
    %429 = vmatpush1.bf16.xpose.msra.mxu0 0
    %430 = vmatprep.mubr.bf16.mxu0 %v389
    %431 = vmatmul.mubr.bf16.gmra.mrb[0].mxu0 %v388
    %v432 = vpop.f32.mrb[0].mxu0
    %v433 = vadd.f32 0.0, %v432
    %v434 = vpop.f32.mrb[0].mxu0
    %v435 = vpop.f32.mrb[0].mxu0
    %v436 = vpop.f32.mrb[0].mxu0
    %437 = vdwg.mxu0
    %v438 = vsub.f32 %v433, %v384
    %v439 = vmul.f32 %v438, 1.442695
    %v440 = vpow.pop %v439
    %v441 = vlaneseq
    %v442 = vshrl.u32 %v441, 7
    %s443 = smul.u32 0, 8
    %v444 = vstv %s443
    %v445 = vadd.s32 %v442, %v444
    %v446 = vlaneseq
    %v447 = vand.u32 %v446, 127
    %vm448 = vcmp.eq.s32.totalorder %v445, %v447
    %v449 = vsel %vm448, %v433, 0.0
    %vm450 = vcmask 64512
    %v451 = vsel %vm450, %v449, 0.0
    %452 = vadd.xlane.f32.xlu0 %v451
    %v453 = vpop.xlane.xlu0 %452
    %v454 = vld [vmem:[#allocation6] sm:$0x1]
    %v455 = vrot.slane %v451, 4
    %v456 = vadd.f32 %v451, %v455
    %v457 = vrot.slane %v456, 2
    %v458 = vadd.f32 %v456, %v457
    %v459 = vrot.slane %v458, 1
    %v460 = vadd.f32 %v458, %v459
    %v461 = vadd.f32 %v454, %v460
    %vm462 = vcmask 57344
    %463 = vst.msk [vmem:[#allocation6] sm:$0x1] %vm462, %v461
    %v464 = vld [vmem:[#allocation3] sm:$0x1]
    %v465 = vsel %vm450, %v440, 0.0
    %v466 = vrot.slane %v465, 4
    %v467 = vadd.f32 %v465, %v466
    %v468 = vrot.slane %v467, 2
    %v469 = vadd.f32 %v467, %v468
    %v470 = vrot.slane %v469, 1
    %v471 = vadd.f32 %v469, %v470
    %v472 = vadd.f32 %v464, %v471
    %473 = vst.msk [vmem:[#allocation3] sm:$0x1] %vm462, %v472
    %v474 = vld [vmem:[#allocation4] sm:$0x1]
    %v475 = vsel %vm450, %v433, 0.0
    %v476 = vrot.slane %v475, 4
    %v477 = vadd.f32 %v475, %v476
    %v478 = vrot.slane %v477, 2
    %v479 = vadd.f32 %v477, %v478
    %v480 = vrot.slane %v479, 1
    %v481 = vadd.f32 %v479, %v480
    %v482 = vadd.f32 %v474, %v481
    %483 = vst.msk [vmem:[#allocation4] sm:$0x1] %vm462, %v482
    %v484 = vld [vmem:[#allocation5] sm:$0x1]
    %v485 = vsel %vm450, %v433, -inf
    %v486 = vrot.slane %v485, 4
    %v487 = vmax.f32 %v485, %v486
    %v488 = vrot.slane %v487, 2
    %v489 = vmax.f32 %v487, %v488
    %v490 = vrot.slane %v489, 1
    %v491 = vmax.f32 %v489, %v490
    %v492 = vmax.f32 %v484, %v491
    %493 = vst.msk [vmem:[#allocation5] sm:$0x1] %vm462, %v492
    %494 = vadd.xlane.f32.xlu0 %v465
    %v495 = vpop.xlane.xlu0 %494
    %v496 = vlog2.pop %v495
    %v497 = vmul.f32 %v496, 0.6931472
    %v498 = vadd.f32 %v384, %v497
    %499 = vadd.xlane.f32.xlu0 %v475
    %v500 = vpop.xlane.xlu0 %499
    %v501 = vmul.f32 %v500, 0.125
    %502 = vmax.xlane.f32.xlu0 %v485
    %v503 = vpop.xlane.xlu0 %502
    %v504 = vsub.f32 %v453, %v498
    %v505 = vmul.f32 %v504, 0.9
    %v506 = vsub.f32 %v501, %v498
    %v507 = vmul.f32 %v506, 0.1
    %v508 = vadd.f32 %v505, %v507
    %v509 = vsub.f32 0.0, %v508
    %s510 = sld [smem:[#allocation7]]
    %vm511 = vcmask 7168
    %v512 = vsel %vm511, %v509, 0.0
    %513 = vadd.xlane.f32.xlu0 %v512
    %v514 = vpop.xlane.xlu0 %513
    %v515 = vrot.slane %v514, 4
    %v516 = vadd.f32 %v514, %v515
    %v517 = vrot.slane %v516, 2
    %v518 = vadd.f32 %v516, %v517
    %v519 = vrot.slane %v518, 1
    %v520 = vadd.f32 %v518, %v519
    %s521 = vtos %v520
    %s522 = sadd.f32 %s510, %s521
    %s523 = scalar_lea.smem [#allocation7], 0
    %524 = sst [smem:[%s523]] %s522
    %s525 = sld [smem:[#allocation7 + $0x1]]
    %vm526 = vcmp.ge.f32.partialorder %v453, %v503
    %v527 = vsel %vm526, 1, 0
    %v528 = vcvt.s32.f32 %v527
    %v529 = vsel %vm511, %v528, 0.0
    %530 = vadd.xlane.f32.xlu0 %v529
    %v531 = vpop.xlane.xlu0 %530
    %v532 = vrot.slane %v531, 4
    %v533 = vadd.f32 %v531, %v532
    %v534 = vrot.slane %v533, 2
    %v535 = vadd.f32 %v533, %v534
    %v536 = vrot.slane %v535, 1
    %v537 = vadd.f32 %v535, %v536
    %s538 = vtos %v537
    %s539 = sadd.f32 %s525, %s538
    %s540 = scalar_lea.smem [#allocation7], 1
    %541 = sst [smem:[%s540]] %s539
    // Predicated region
    $region38: #{tpu_custom_call.1} parent=1 // pred_check
      %p542 = pneg %p70
    $region39: #{tpu_custom_call.1} parent=1 // pred_check_branch
      %544 = sbr.rel (%p542) target = $region41
    $region40: #{tpu_custom_call.1} parent=1 // pred_region
      %v545 = vld [vmem:[#allocation3] sm:$0x1]
      %v546 = vlog2.pop %v545
      %v547 = vmul.f32 %v546, 0.6931472
      %v548 = vadd.f32 %v384, %v547
      %v549 = vld [vmem:[#allocation4] sm:$0x1]
      %v550 = vmul.f32 %v549, 0.125
      %v551 = vld [vmem:[#allocation6] sm:$0x1]
      %v552 = vsub.f32 %v551, %v548
      %v553 = vmul.f32 %v552, 0.9
      %v554 = vsub.f32 %v550, %v548
      %v555 = vmul.f32 %v554, 0.1
      %v556 = vadd.f32 %v553, %v555
      %v557 = vsub.f32 0.0, %v556
      %v558 = vsel %vm462, %v557, 0.0
      %559 = vadd.xlane.f32.xlu0 %v558
      %v560 = vpop.xlane.xlu0 %559
      %v561 = vrot.slane %v560, 4
      %v562 = vadd.f32 %v560, %v561
      %v563 = vrot.slane %v562, 2
      %v564 = vadd.f32 %v562, %v563
      %v565 = vrot.slane %v564, 1
      %v566 = vadd.f32 %v564, %v565
      %s567 = vtos %v566
      %s568 = smul.f32 %s567, 0.125
      %v569 = vld [vmem:[#allocation5] sm:$0x1]
      %vm570 = vcmp.ge.f32.partialorder %v551, %v569
      %v571 = vsel %vm570, 1, 0
      %v572 = vcvt.s32.f32 %v571
      %v573 = vsel %vm462, %v572, 0.0
      %574 = vadd.xlane.f32.xlu0 %v573
      %v575 = vpop.xlane.xlu0 %574
      %v576 = vrot.slane %v575, 4
      %v577 = vadd.f32 %v575, %v576
      %v578 = vrot.slane %v577, 2
      %v579 = vadd.f32 %v577, %v578
      %v580 = vrot.slane %v579, 1
      %v581 = vadd.f32 %v579, %v580
      %s582 = vtos %v581
      %s583 = smul.f32 %s582, 0.125
      %s584 = sld [smem:[#allocation7]]
      %s585 = smul.f32 %s584, 0.125
      %s586 = sld [smem:[#allocation7 + $0x1]]
      %s587 = smul.f32 %s586, 0.125
      %s588 = sadd.f32 %s585, %s568
      %s589 = smul.f32 %s588, 0.5
      %s590 = scalar_lea.smem [#allocation15], 0
      %591 = sst [smem:[%s590]] %s589
      %s592 = scalar_lea.smem [#allocation16], 0
      %593 = sst [smem:[%s592]] %s587
      %s594 = scalar_lea.smem [#allocation18], 0
      %595 = sst [smem:[%s594]] %s583
    $region41: #{tpu_custom_call.1} parent=1 // pred_fallthru
      _
    // Predicated region
    $region42: #{tpu_custom_call.1} parent=1 // pred_check
      _
    $region43: #{tpu_custom_call.1} parent=1 // pred_check_branch
      %597 = sbr.rel (0) target = $region45
    $region44: #{tpu_custom_call.1} parent=1 // pred_region
      %s599 = ssub.s32 16, 16
      %600 = vsyncadd [#allocation11], %s599
      %603 = dma.smem_to_hbm [#allocation15], 16, %s5, [#allocation11]
    $region45: #{tpu_custom_call.1} parent=1 // pred_fallthru
      _
    // Predicated region
    $region46: #{tpu_custom_call.1} parent=1 // pred_check
      _
    $region47: #{tpu_custom_call.1} parent=1 // pred_check_branch
      %605 = sbr.rel (0) target = $region49
    $region48: #{tpu_custom_call.1} parent=1 // pred_region
      %s607 = ssub.s32 16, 16
      %608 = vsyncadd [#allocation17], %s607
      %611 = dma.smem_to_hbm [#allocation16], 16, %s6, [#allocation17]
    $region49: #{tpu_custom_call.1} parent=1 // pred_fallthru
      _
    // Predicated region
    $region50: #{tpu_custom_call.1} parent=1 // pred_check
      _
    $region51: #{tpu_custom_call.1} parent=1 // pred_check_branch
      %613 = sbr.rel (0) target = $region53
    $region52: #{tpu_custom_call.1} parent=1 // pred_region
      %s615 = ssub.s32 16, 16
      %616 = vsyncadd [#allocation17], %s615
      %619 = dma.smem_to_hbm [#allocation18], 16, %s7, [#allocation17]
    $region53: #{tpu_custom_call.1} parent=1 // pred_fallthru
      _
    // Predicated region
    $region54: #{tpu_custom_call.1} parent=1 // pred_check
      _
    $region55: #{tpu_custom_call.1} parent=1 // pred_check_branch
      %621 = sbr.rel (0) target = $region57
    $region56: #{tpu_custom_call.1} parent=1 // pred_region
      %622 = dma.done [#allocation11], 16
    $region57: #{tpu_custom_call.1} parent=1 // pred_fallthru
      _
    // Predicated region
    $region58: #{tpu_custom_call.1} parent=1 // pred_check
      _
    $region59: #{tpu_custom_call.1} parent=1 // pred_check_branch
      %624 = sbr.rel (0) target = $region61
    $region60: #{tpu_custom_call.1} parent=1 // pred_region
      %625 = dma.done [#allocation17], 16
    $region61: #{tpu_custom_call.1} parent=1 // pred_fallthru
      _
    // Predicated region
    $region62: #{tpu_custom_call.1} parent=1 // pred_check
      _
    $region63: #{tpu_custom_call.1} parent=1 // pred_check_branch
      %627 = sbr.rel (0) target = $region65
    $region64: #{tpu_custom_call.1} parent=1 // pred_region
      %628 = dma.done [#allocation17], 16
    $region65: #{tpu_custom_call.1} parent=1 // pred_fallthru
      _
    %629 = sfence
    %630 = vsyncpa [#allocation10], 1
    %631 = vsyncpa [#allocation13], 1
    %632 = vsyncpa [#allocation11], 1
    %633 = vsyncpa [#allocation17], 1

</llo_original>
